<compile_context>
chip_gen: v6e
topology: v6e:2x2x1
jax: 0.10.0
libtpu: 0.0.40
codegen_flags: <defaults>
</compile_context>

<pallas_src>
import functools

import jax
import jax.numpy as jnp
from jax.experimental import pallas as pl
from jax.experimental.pallas import tpu as pltpu


def _round_up(x: int, m: int) -> int:
    return (x + m - 1) // m * m


def _tpu_generation() -> str:
    """Best-effort TPU generation detection for tiling/VMEM defaults."""
    try:
        kind = jax.devices()[0].device_kind.lower()
    except Exception:  # pragma: no cover - non-TPU / query failure
        return "v6e"
    if "v5 lite" in kind or "v5e" in kind or "v5lite" in kind:
        return "v5e"
    if "v7" in kind or "tpu7" in kind or "7x" in kind:
        return "v7x"
    if "v6" in kind:
        return "v6e"
    return "v6e"


def _mwp_kernel(x_ref, w1_ref, b1_ref, w2_ref, bias_ref, o_ref, hn_ref,
                *, h_true: int, h_pad: int):
    """One (tile_m, tile_n) output block.

    x_ref   : (tm, Hp)  row tile of flattened hidden states (zero-padded cols)
    w1_ref  : (Hp, Hp)  zero-padded W_dense^T (constant index_map -> fetched once)
    b1_ref  : (1, Hp)   zero-padded b_dense (f32)
    w2_ref  : (Hp, tn)  gamma-folded, zero-padded W_decoder^T vocab tile
    bias_ref: (1, tn)   folded bias vocab tile (f32)
    o_ref   : (tm, tn)  output logits tile
    hn_ref  : (tm, Hp)  VMEM scratch caching the LayerNorm output for this row tile
    """
    # Dense + LayerNorm only once per row tile (vocab axis is the inner,
    # sequential "arbitrary" grid axis).
    @pl.when(pl.program_id(1) == 0)
    def _():
        h = jnp.dot(x_ref[...], w1_ref[...], preferred_element_type=jnp.float32)
        h = h + b1_ref[...].astype(jnp.float32)
        inv_h = 1.0 / float(h_true)
        if h_pad == h_true:
            u = jnp.sum(h, axis=-1, keepdims=True) * inv_h
            d = h - u
        else:
            # Padded hidden columns of h are exactly zero (zero-padded x cols,
            # W1 cols and b1), so the sum over the padded width equals the true
            # sum; mask d so padded columns do not pollute the variance.
            u = jnp.sum(h, axis=-1, keepdims=True) * inv_h
            col = jax.lax.broadcasted_iota(jnp.int32, h.shape, 1)
            d = jnp.where(col < h_true, h - u, 0.0)
        s = jnp.sum(d * d, axis=-1, keepdims=True) * inv_h
        hn_ref[...] = (d * jax.lax.rsqrt(s + 1e-12)).astype(hn_ref.dtype)

    # Decoder matmul for this vocab tile (MXU, f32 accumulation) + folded bias.
    logits = jnp.dot(hn_ref[...], w2_ref[...], preferred_element_type=jnp.float32)
    o_ref[...] = (logits + bias_ref[...].astype(jnp.float32)).astype(o_ref.dtype)


def prepare_params(params, *, use_bf16_mxu=True):
    """One-time parameter prep.

    Folds gamma/beta into the decoder weight/bias (algebraically identical to the
    reference), zero-pads H and V to multiples of 128 (so both matmuls are
    lane/MXU-dense), and casts MXU operands.  Called once, not per forward.
    """
    f32 = jnp.float32
    w1 = params["w_dense_t"].astype(f32)                  # (H, H)
    b1 = params["b_dense"].astype(f32).reshape(1, -1)     # (1, H)
    gamma = params["gamma"].astype(f32).reshape(-1)       # (H,)
    beta = params["beta"].astype(f32).reshape(-1)         # (H,)
    w2 = params["w_decoder_t"].astype(f32)                # (H, V)
    bias = params["bias"].astype(f32).reshape(1, -1)      # (1, V)

    H = w1.shape[0]
    V = w2.shape[1]

    # logits = (gamma*hn + beta) @ W2 + bias
    #        ==  hn @ (diag(gamma) W2) + (beta @ W2 + bias)
    w2_eff = gamma[:, None] * w2
    bias_eff = beta[None, :] @ w2 + bias

    Hp = max(128, _round_up(H, 128))
    Vp = max(128, _round_up(V, 128))
    if Hp != H:
        w1 = jnp.pad(w1, ((0, Hp - H), (0, Hp - H)))
        b1 = jnp.pad(b1, ((0, 0), (0, Hp - H)))
        w2_eff = jnp.pad(w2_eff, ((0, Hp - H), (0, 0)))
    if Vp != V:
        w2_eff = jnp.pad(w2_eff, ((0, 0), (0, Vp - V)))
        bias_eff = jnp.pad(bias_eff, ((0, 0), (0, Vp - V)))

    mxu_dtype = jnp.bfloat16 if use_bf16_mxu else jnp.float32
    return {
        "w1": w1.astype(mxu_dtype),        # (Hp, Hp)
        "b1": b1,                          # (1, Hp) f32 (added post-accumulation)
        "w2": w2_eff.astype(mxu_dtype),    # (Hp, Vp)
        "bias": bias_eff,                  # (1, Vp) f32
        "hidden_in": H,
        "hidden_pad": Hp,
        "vocab": V,
        "vocab_pad": Vp,
    }


def masked_word_predictions(hidden_states, prepped, *, tile_m=None, tile_n=None,
                            out_dtype=None):
    """hidden_states: [B, S, H] -> logits [B, S, V]."""
    B, S, H_in = hidden_states.shape
    w1, b1, w2, bias = prepped["w1"], prepped["b1"], prepped["w2"], prepped["bias"]
    H = prepped["hidden_in"]
    Hp = prepped["hidden_pad"]
    V = prepped["vocab"]
    Vp = prepped["vocab_pad"]
    assert H_in == H, f"hidden size mismatch: {H_in} vs {H}"

    compute_dtype = w1.dtype
    if out_dtype is None:
        out_dtype = hidden_states.dtype

    gen = _tpu_generation()
    if tile_m is None:
        # W2 arithmetic intensity per byte == tile_m; pick per-generation so the
        # decoder matmul is MXU-bound, not HBM-bound on W2 re-streaming.
        tile_m = {"v5e": 256, "v6e": 768, "v7x": 640}[gen]
    if tile_n is None:
        tile_n = 1024

    # --- row (M) tiling: 16-row alignment for bf16 sublane packing ---
    M = B * S
    row_align = 16 if compute_dtype == jnp.bfloat16 else 8
    tm = _round_up(min(tile_m, _round_up(M, row_align)), row_align)
    if gen == "v7x" and M > 2 * row_align:
        # Keep at least two row tiles so both v7x TensorCores get work.
        tm = min(tm, _round_up(-(-M // 2), row_align))
    Mp = _round_up(M, tm)

    # --- vocab (N) tiling: lane-dense multiple of 128 that divides padded V ---
    tn = min(_round_up(tile_n, 128), Vp)
    while Vp % tn != 0:
        tn -= 128

    # Per-call input padding (activations only; weights were padded in prep).
    x2d = hidden_states.reshape(M, H).astype(compute_dtype)
    if Mp != M or Hp != H:
        x2d = jnp.pad(x2d, ((0, Mp - M), (0, Hp - H)))

    grid = (Mp // tm, Vp // tn)

    bpe = jnp.dtype(compute_dtype).itemsize
    obpe = jnp.dtype(out_dtype).itemsize
    single_buffer_resident = gen == "v7x"   # 64 MiB/TC: halve W_dense residency
    w1_bufs = 1 if single_buffer_resident else 2

    # VMEM budget: pipelined tiles + resident weights + hn scratch.
    vmem_bytes = (
        2 * tm * Hp * bpe          # x row tile
        + w1_bufs * Hp * Hp * bpe  # W_dense^T (constant index_map)
        + 2 * Hp * 4               # b_dense
        + 2 * Hp * tn * bpe        # W_decoder^T vocab tile
        + 2 * tn * 4               # bias vocab tile
        + 2 * tm * tn * obpe       # output tile
        + tm * Hp * bpe            # hn scratch
    )
    vmem_cap = (56 << 20) if gen == "v7x" else (100 << 20)
    vmem_limit = min(max(int(1.3 * vmem_bytes) + (2 << 20), 16 << 20), vmem_cap)

    # W2 is re-streamed once per row tile; account for it in the scheduler hint.
    cost = pl.CostEstimate(
        flops=2 * Mp * Hp * (Hp + Vp),
        transcendentals=0,
        bytes_accessed=(Mp * Hp + Hp * Hp) * bpe
        + (Mp // tm) * Hp * Vp * bpe
        + Mp * Vp * obpe
        + (Hp + Vp) * 4,
    )

    w1_spec = pl.BlockSpec((Hp, Hp), lambda i, j: (0, 0))
    b1_spec = pl.BlockSpec((1, Hp), lambda i, j: (0, 0))
    if single_buffer_resident:
        # Constant block index -> fetched once; single buffer halves VMEM residency.
        w1_spec = pl.BlockSpec((Hp, Hp), lambda i, j: (0, 0),
                               pipeline_mode=pl.Buffered(1))
        b1_spec = pl.BlockSpec((1, Hp), lambda i, j: (0, 0),
                               pipeline_mode=pl.Buffered(1))

    kernel = functools.partial(_mwp_kernel, h_true=H, h_pad=Hp)

    out2d = pl.pallas_call(
        kernel,
        out_shape=jax.ShapeDtypeStruct((Mp, Vp), out_dtype),
        grid_spec=pltpu.PrefetchScalarGridSpec(
            num_scalar_prefetch=0,
            grid=grid,
            in_specs=[
                pl.BlockSpec((tm, Hp), lambda i, j: (i, 0)),   # x row tile
                w1_spec,                                       # W_dense^T (resident)
                b1_spec,                                       # b_dense   (resident)
                pl.BlockSpec((Hp, tn), lambda i, j: (0, j)),   # W_decoder^T vocab tile
                pl.BlockSpec((1, tn), lambda i, j: (0, j)),    # folded bias vocab tile
            ],
            out_specs=pl.BlockSpec((tm, tn), lambda i, j: (i, j)),
            scratch_shapes=[pltpu.VMEM((tm, Hp), compute_dtype)],  # hn row-tile cache
        ),
        compiler_params=pltpu.CompilerParams(
            dimension_semantics=("parallel", "arbitrary"),
            vmem_limit_bytes=vmem_limit,
        ),
        cost_estimate=cost,
    )(x2d, w1, b1, w2, bias)

    return out2d[:M, :V].reshape(B, S, V)


def init_params(key, hidden_size, vocab_size, dtype=jnp.float32):
    k1, k2, k3, k4, k5 = jax.random.split(key, 5)
    scale = 0.02
    return {
        # stored transposed: (in, out)
        "w_dense_t": (scale * jax.random.normal(k1, (hidden_size, hidden_size))).astype(dtype),
        "b_dense": (scale * jax.random.normal(k3, (1, hidden_size))).astype(dtype),
        "gamma": (1.0 + 0.1 * jax.random.normal(k4, (1, hidden_size))).astype(dtype),
        "beta": (0.1 * jax.random.normal(k5, (1, hidden_size))).astype(dtype),
        "w_decoder_t": (scale * jax.random.normal(k2, (hidden_size, vocab_size))).astype(dtype),
        "bias": jnp.zeros((1, vocab_size), dtype),
    }


def _reference(hidden_states, params):
    """Pure-JAX f32 reference mirroring the PyTorch forward (gelu unused, as in spec)."""
    x = hidden_states.astype(jnp.float32)
    h = x @ params["w_dense_t"].astype(jnp.float32) + params["b_dense"].astype(jnp.float32).reshape(-1)
    u = jnp.mean(h, axis=-1, keepdims=True)
    s = jnp.mean((h - u) ** 2, axis=-1, keepdims=True)
    h = (h - u) / jnp.sqrt(s + 1e-12)
    h = params["gamma"].astype(jnp.float32).reshape(-1) * h + params["beta"].astype(jnp.float32).reshape(-1)
    logits = h @ params["w_decoder_t"].astype(jnp.float32) + params["bias"].astype(jnp.float32).reshape(-1)
    return logits


if __name__ == "__main__":
    # Small config consistent with the module: config.hidden_size, config.vocab_size
    B, S, H, V = 2, 8, 32, 8

    key = jax.random.PRNGKey(0)
    kx, kp = jax.random.split(key)
    hidden_states = jax.random.normal(kx, (B, S, H), dtype=jnp.float32)
    params = init_params(kp, hidden_size=H, vocab_size=V)
    ref = _reference(hidden_states, params)

    # f32 MXU-operand path.
    prepped_f32 = prepare_params(params, use_bf16_mxu=False)
    out_f32 = jax.block_until_ready(masked_word_predictions(hidden_states, prepped_f32))
    assert out_f32.shape == (B, S, V)
    err = float(jnp.max(jnp.abs(out_f32.astype(jnp.float32) - ref)))
    assert err < 5e-3, f"f32 mismatch vs reference: {err}"

    # bf16 MXU path with bf16 logits (default perf config): looser tolerance.
    prepped_bf16 = prepare_params(params, use_bf16_mxu=True)
    out_bf16 = jax.block_until_ready(
        masked_word_predictions(hidden_states, prepped_bf16, out_dtype=jnp.bfloat16))
    assert out_bf16.shape == (B, S, V)
    err = float(jnp.max(jnp.abs(out_bf16.astype(jnp.float32) - ref)))
    assert err < 5e-2, f"bf16 mismatch vs reference: {err}"

    print("KERNEL_OK")
</pallas_src>

<mosaic_0001>
module attributes {stable_mosaic.version = 11 : i64} {
  func.func @_mwp_kernel(%arg0: i32, %arg1: i32, %arg2: memref<16x128xf32, #tpu.memory_space<vmem>>, %arg3: memref<128x128xf32, #tpu.memory_space<vmem>>, %arg4: memref<1x128xf32, #tpu.memory_space<vmem>>, %arg5: memref<128x128xf32, #tpu.memory_space<vmem>>, %arg6: memref<1x128xf32, #tpu.memory_space<vmem>>, %arg7: memref<16x128xf32, #tpu.memory_space<vmem>>, %arg8: memref<16x128xf32, #tpu.memory_space<vmem>>) attributes {dimension_semantics = [#tpu.dimension_semantics<parallel>, #tpu.dimension_semantics<arbitrary>], iteration_bounds = array<i64: 1, 1>, scalar_prefetch = 0 : i64, scratch_operands = 1 : i64, tpu.core_type = #tpu.core_type<tc>, window_params = [{transform_indices = @transform_0, window_bounds = array<i64: 16, 128>}, {pipeline_mode = #tpu.pipeline_mode<synchronous>, transform_indices = @transform_1, window_bounds = array<i64: 128, 128>}, {pipeline_mode = #tpu.pipeline_mode<synchronous>, transform_indices = @transform_2, window_bounds = array<i64: 1, 128>}, {transform_indices = @transform_3, window_bounds = array<i64: 128, 128>}, {transform_indices = @transform_4, window_bounds = array<i64: 1, 128>}, {transform_indices = @transform_5, window_bounds = array<i64: 16, 128>}]} {
    %c0_i32 = arith.constant 0 : i32
    %0 = arith.cmpi eq, %arg1, %c0_i32 : i32
    %1 = arith.extui %0 : i1 to i32
    %c0_i32_0 = arith.constant 0 : i32
    %2 = arith.cmpi ne, %1, %c0_i32_0 : i32
    scf.if %2 {
      %c0_8 = arith.constant 0 : index
      %c0_9 = arith.constant 0 : index
      %10 = vector.load %arg2[%c0_8, %c0_9] : memref<16x128xf32, #tpu.memory_space<vmem>>, vector<16x128xf32>
      %c0_10 = arith.constant 0 : index
      %c0_11 = arith.constant 0 : index
      %11 = vector.load %arg3[%c0_10, %c0_11] : memref<128x128xf32, #tpu.memory_space<vmem>>, vector<128x128xf32>
      %cst_12 = arith.constant dense<0.000000e+00> : vector<16x128xf32>
      %12 = tpu.matmul %10, %11, %cst_12 {dimension_numbers = #tpu.dot_dimension_numbers<[1], [0], [0], [1], [0, 0, 1, 1], [], []>} : vector<16x128xf32>, vector<128x128xf32>, vector<16x128xf32> -> vector<16x128xf32>
      %c0_13 = arith.constant 0 : index
      %c0_14 = arith.constant 0 : index
      %13 = vector.load %arg4[%c0_13, %c0_14] : memref<1x128xf32, #tpu.memory_space<vmem>>, vector<1x128xf32>
      %14 = vector.broadcast %13 : vector<1x128xf32> to vector<16x128xf32>
      %15 = arith.addf %12, %14 : vector<16x128xf32>
      %cst_15 = arith.constant dense<0.000000e+00> : vector<16xf32>
      %16 = vector.multi_reduction <add>, %15, %cst_15 [1] : vector<16x128xf32> to vector<16xf32>
      %17 = vector.shape_cast %16 : vector<16xf32> to vector<16x1xf32>
      %cst_16 = arith.constant 3.125000e-02 : f32
      %18 = vector.broadcast %cst_16 : f32 to vector<16x1xf32>
      %19 = arith.mulf %17, %18 : vector<16x1xf32>
      %20 = tpu.iota {dimensions = array<i32: 1>} : vector<16x128xi32>
      %c32_i32 = arith.constant 32 : i32
      %21 = vector.broadcast %c32_i32 : i32 to vector<16x128xi32>
      %22 = arith.cmpi slt, %20, %21 : vector<16x128xi32>
      %23 = vector.broadcast %19 : vector<16x1xf32> to vector<16x128xf32>
      %24 = arith.subf %15, %23 : vector<16x128xf32>
      %cst_17 = arith.constant 0.000000e+00 : f32
      %25 = vector.broadcast %cst_17 : f32 to vector<16x128xf32>
      %26 = arith.select %22, %24, %25 : vector<16x128xi1>, vector<16x128xf32>
      %27 = arith.mulf %26, %26 : vector<16x128xf32>
      %cst_18 = arith.constant dense<0.000000e+00> : vector<16xf32>
      %28 = vector.multi_reduction <add>, %27, %cst_18 [1] : vector<16x128xf32> to vector<16xf32>
      %29 = vector.shape_cast %28 : vector<16xf32> to vector<16x1xf32>
      %cst_19 = arith.constant 3.125000e-02 : f32
      %30 = vector.broadcast %cst_19 : f32 to vector<16x1xf32>
      %31 = arith.mulf %29, %30 : vector<16x1xf32>
      %cst_20 = arith.constant 9.99999996E-13 : f32
      %32 = vector.broadcast %cst_20 : f32 to vector<16x1xf32>
      %33 = arith.addf %31, %32 : vector<16x1xf32>
      %34 = math.rsqrt %33 : vector<16x1xf32>
      %35 = vector.broadcast %34 : vector<16x1xf32> to vector<16x128xf32>
      %36 = arith.mulf %26, %35 : vector<16x128xf32>
      %c0_21 = arith.constant 0 : index
      %c0_22 = arith.constant 0 : index
      %37 = vector.load %arg8[%c0_21, %c0_22] : memref<16x128xf32, #tpu.memory_space<vmem>>, vector<16x128xf32>
      tpu.vector_store %arg8[%c0_21, %c0_22], %36 {strides = array<i32>} : memref<16x128xf32, #tpu.memory_space<vmem>>, vector<16x128xf32>,
    } else {
    }
    %c0 = arith.constant 0 : index
    %c0_1 = arith.constant 0 : index
    %3 = vector.load %arg8[%c0, %c0_1] : memref<16x128xf32, #tpu.memory_space<vmem>>, vector<16x128xf32>
    %c0_2 = arith.constant 0 : index
    %c0_3 = arith.constant 0 : index
    %4 = vector.load %arg5[%c0_2, %c0_3] : memref<128x128xf32, #tpu.memory_space<vmem>>, vector<128x128xf32>
    %cst = arith.constant dense<0.000000e+00> : vector<16x128xf32>
    %5 = tpu.matmul %3, %4, %cst {dimension_numbers = #tpu.dot_dimension_numbers<[1], [0], [0], [1], [0, 0, 1, 1], [], []>} : vector<16x128xf32>, vector<128x128xf32>, vector<16x128xf32> -> vector<16x128xf32>
    %c0_4 = arith.constant 0 : index
    %c0_5 = arith.constant 0 : index
    %6 = vector.load %arg6[%c0_4, %c0_5] : memref<1x128xf32, #tpu.memory_space<vmem>>, vector<1x128xf32>
    %7 = vector.broadcast %6 : vector<1x128xf32> to vector<16x128xf32>
    %8 = arith.addf %5, %7 : vector<16x128xf32>
    %c0_6 = arith.constant 0 : index
    %c0_7 = arith.constant 0 : index
    %9 = vector.load %arg7[%c0_6, %c0_7] : memref<16x128xf32, #tpu.memory_space<vmem>>, vector<16x128xf32>
    tpu.vector_store %arg7[%c0_6, %c0_7], %8 {strides = array<i32>} : memref<16x128xf32, #tpu.memory_space<vmem>>, vector<16x128xf32>,
    return
  }
  func.func @transform_0(%arg0: i32, %arg1: i32) -> (i32, i32) {
    %c0_i32 = arith.constant 0 : i32
    %c0_i32_0 = arith.constant 0 : i32
    return %arg0, %c0_i32 : i32, i32
  }
  func.func @transform_1(%arg0: i32, %arg1: i32) -> (i32, i32) {
    %c0_i32 = arith.constant 0 : i32
    %c0_i32_0 = arith.constant 0 : i32
    %c0_i32_1 = arith.constant 0 : i32
    return %c0_i32, %c0_i32_0 : i32, i32
  }
  func.func @transform_2(%arg0: i32, %arg1: i32) -> (i32, i32) {
    %c0_i32 = arith.constant 0 : i32
    %c0_i32_0 = arith.constant 0 : i32
    %c0_i32_1 = arith.constant 0 : i32
    return %c0_i32, %c0_i32_0 : i32, i32
  }
  func.func @transform_3(%arg0: i32, %arg1: i32) -> (i32, i32) {
    %c0_i32 = arith.constant 0 : i32
    %c0_i32_0 = arith.constant 0 : i32
    return %c0_i32, %arg1 : i32, i32
  }
  func.func @transform_4(%arg0: i32, %arg1: i32) -> (i32, i32) {
    %c0_i32 = arith.constant 0 : i32
    %c0_i32_0 = arith.constant 0 : i32
    return %c0_i32, %arg1 : i32, i32
  }
  func.func @transform_5(%arg0: i32, %arg1: i32) -> (i32, i32) {
    %c0_i32 = arith.constant 0 : i32
    return %arg0, %arg1 : i32, i32
  }
}

</mosaic_0001>

<llo_original>
// kernel: tpu_custom_call.1
$region0: #{tpu_custom_call.1}
  #allocation0 [shape = 'u32[]', space=smem, size = 0x4, offset = 0x4, fixed_abs, tag = 'smem constant byte address 0x4 - core index']
  #allocation1 [shape = 'u32[144,128]{1,0:T(1,128)}', space=vmem, size = 0x12000, scoped, tag = 'internal scratch']
  #allocation2 [shape = 'f32[16,128]{1,0:T(8,128)}', space=vmem, size = 0x2000, scoped, tag = 'scratch operand']
  %s0 = inlined_call_operand.hbm [shape: f32[16,128], index: 0, kind: input, shape index: {}]
  %s1 = inlined_call_operand.hbm [shape: f32[128,128], index: 1, kind: input, shape index: {}]
  %s2 = inlined_call_operand.vmem [shape: f32[1,128], index: 2, kind: input, shape index: {}]
  %s3 = inlined_call_operand.hbm [shape: f32[128,128], index: 3, kind: input, shape index: {}]
  %s4 = inlined_call_operand.vmem [shape: f32[1,128], index: 4, kind: input, shape index: {}]
  %s5 = inlined_call_operand.hbm [shape: f32[16,128], index: 5, kind: output, shape index: {}]
  %s6 = sld [smem:[#allocation0]]
  $region46: #{tpu_custom_call.1} parent=0
    _
  %s8 = ssub.s32 1, %s6
  %s9 = scalar_select 0, %s8, %s6
  $region1: #{tpu_custom_call.1} parent=0
    #allocation3 [shape = 'u8[8192]{0}', space=vmem, size = 0x2000, scoped, tag = 'input window, operand 0, single buffered']
    #allocation4 [shape = 's32[1]{0}', space=sflag, size = 0x4, scoped, tag = 'scoped memory for tpu_custom_call.1']
    #allocation5 [shape = 's32[1]{0}', space=sflag, size = 0x4, scoped, tag = 'scoped memory for tpu_custom_call.1']
    #allocation6 [shape = 'u8[65536]{0}', space=vmem, size = 0x10000, scoped, tag = 'input window, operand 1, single buffered']
    #allocation7 [shape = 's32[1]{0}', space=sflag, size = 0x4, scoped, tag = 'scoped memory for tpu_custom_call.1']
    #allocation8 [shape = 'u8[65536]{0}', space=vmem, size = 0x10000, scoped, tag = 'input window, operand 3, single buffered']
    #allocation9 [shape = 'u8[8192]{0}', space=vmem, size = 0x2000, scoped, tag = 'output window, operand 0, single buffered']
    %10 = vsyncpa [#allocation4], 0
    %11 = vsyncpa [#allocation7], 0
    %12 = vsyncpa [#allocation5], 0
    // Predicated region
    $region2: #{tpu_custom_call.1} parent=1 // pred_check
      _
    $region3: #{tpu_custom_call.1} parent=1 // pred_check_branch
      %14 = sbr.rel (0) target = $region5
    $region4: #{tpu_custom_call.1} parent=1 // pred_region
      %s16 = ssub.s32 256, 256
      %17 = vsyncadd [#allocation4], %s16
      %s18 = sshll.u32 [#allocation3], 4
      %s19 = int_to_ptr.vmem [resolvable:$true] %s18
      %24 = dma.hbm_to_vmem [thread:$0]  %s0, 256, %s19, [#allocation4], 128, 128, 8
    $region5: #{tpu_custom_call.1} parent=1 // pred_fallthru
      _
    // Predicated region
    $region6: #{tpu_custom_call.1} parent=1 // pred_check
      _
    $region7: #{tpu_custom_call.1} parent=1 // pred_check_branch
      %26 = sbr.rel (0) target = $region9
    $region8: #{tpu_custom_call.1} parent=1 // pred_region
      %s28 = ssub.s32 2048, 2048
      %29 = vsyncadd [#allocation7], %s28
      %s30 = sshll.u32 [#allocation6], 4
      %s31 = int_to_ptr.vmem [resolvable:$true] %s30
      %36 = dma.hbm_to_vmem [thread:$0]  %s1, 2048, %s31, [#allocation7], 128, 128, 8
    $region9: #{tpu_custom_call.1} parent=1 // pred_fallthru
      _
    // Predicated region
    $region10: #{tpu_custom_call.1} parent=1 // pred_check
      _
    $region11: #{tpu_custom_call.1} parent=1 // pred_check_branch
      %38 = sbr.rel (0) target = $region13
    $region12: #{tpu_custom_call.1} parent=1 // pred_region
      _
    $region13: #{tpu_custom_call.1} parent=1 // pred_fallthru
      _
    // Predicated region
    $region14: #{tpu_custom_call.1} parent=1 // pred_check
      _
    $region15: #{tpu_custom_call.1} parent=1 // pred_check_branch
      %40 = sbr.rel (0) target = $region17
    $region16: #{tpu_custom_call.1} parent=1 // pred_region
      %s42 = ssub.s32 2048, 2048
      %43 = vsyncadd [#allocation7], %s42
      %s44 = sshll.u32 [#allocation8], 4
      %s45 = int_to_ptr.vmem [resolvable:$true] %s44
      %50 = dma.hbm_to_vmem [thread:$0]  %s3, 2048, %s45, [#allocation7], 128, 128, 8
    $region17: #{tpu_custom_call.1} parent=1 // pred_fallthru
      _
    // Predicated region
    $region18: #{tpu_custom_call.1} parent=1 // pred_check
      _
    $region19: #{tpu_custom_call.1} parent=1 // pred_check_branch
      %52 = sbr.rel (0) target = $region21
    $region20: #{tpu_custom_call.1} parent=1 // pred_region
      _
    $region21: #{tpu_custom_call.1} parent=1 // pred_fallthru
      _
    // Predicated region
    $region22: #{tpu_custom_call.1} parent=1 // pred_check
      _
    $region23: #{tpu_custom_call.1} parent=1 // pred_check_branch
      %54 = sbr.rel (0) target = $region25
    $region24: #{tpu_custom_call.1} parent=1 // pred_region
      %55 = dma.done [#allocation4], 256
    $region25: #{tpu_custom_call.1} parent=1 // pred_fallthru
      _
    // Predicated region
    $region26: #{tpu_custom_call.1} parent=1 // pred_check
      _
    $region27: #{tpu_custom_call.1} parent=1 // pred_check_branch
      %57 = sbr.rel (0) target = $region29
    $region28: #{tpu_custom_call.1} parent=1 // pred_region
      %58 = dma.done [#allocation7], 2048
    $region29: #{tpu_custom_call.1} parent=1 // pred_fallthru
      _
    // Predicated region
    $region30: #{tpu_custom_call.1} parent=1 // pred_check
      _
    $region31: #{tpu_custom_call.1} parent=1 // pred_check_branch
      %60 = sbr.rel (0) target = $region33
    $region32: #{tpu_custom_call.1} parent=1 // pred_region
      %61 = dma.done [#allocation7], 2048
    $region33: #{tpu_custom_call.1} parent=1 // pred_fallthru
      _
    %p62 = scmp.eq.s32.totalorder 0, 0
    // Predicated region
    $region34: #{tpu_custom_call.1} parent=1 // pred_check
      %p63 = pneg %p62
    $region35: #{tpu_custom_call.1} parent=1 // pred_check_branch
      %65 = sbr.rel (%p63) target = $region37
    $region36: #{tpu_custom_call.1} parent=1 // pred_region
      %v66 = vld [vmem:[#allocation3] sm:$0xff]
      %v67 = vld [vmem:[#allocation3 + $0x8] sm:$0xff]
      %v68 = vld [vmem:[#allocation6] sm:$0xff]
      %v69 = vld [vmem:[#allocation6 + $0x8] sm:$0xff]
      %v70 = vld [vmem:[#allocation6 + $0x10] sm:$0xff]
      %v71 = vld [vmem:[#allocation6 + $0x18] sm:$0xff]
      %v72 = vld [vmem:[#allocation6 + $0x20] sm:$0xff]
      %v73 = vld [vmem:[#allocation6 + $0x28] sm:$0xff]
      %v74 = vld [vmem:[#allocation6 + $0x30] sm:$0xff]
      %v75 = vld [vmem:[#allocation6 + $0x38] sm:$0xff]
      %v76 = vld [vmem:[#allocation6 + $0x40] sm:$0xff]
      %v77 = vld [vmem:[#allocation6 + $0x48] sm:$0xff]
      %v78 = vld [vmem:[#allocation6 + $0x50] sm:$0xff]
      %v79 = vld [vmem:[#allocation6 + $0x58] sm:$0xff]
      %v80 = vld [vmem:[#allocation6 + $0x60] sm:$0xff]
      %v81 = vld [vmem:[#allocation6 + $0x68] sm:$0xff]
      %v82 = vld [vmem:[#allocation6 + $0x70] sm:$0xff]
      %v83 = vld [vmem:[#allocation6 + $0x78] sm:$0xff]
      %v84 = vld [vmem:[%s2] sm:$0x1]
      %v86 = vlaneseq
      %v87 = vshrl.u32 %v86, 7
      %v88 = vsub.s32 0, %v87
      %v89 = vrot.slane %v84, %v88
      %91 = vmatprep.subr.mxu0 0.0
      %92 = vmatpush1.msra.mxu0 %v83
      %93 = vmatprep.subr.mxu0 0.0
      %94 = vmatpush1.msra.mxu0 %v82
      %95 = vmatprep.subr.mxu0 0.0
      %96 = vmatpush1.msra.mxu0 %v81
      %97 = vmatprep.subr.mxu0 0.0
      %98 = vmatpush1.msra.mxu0 %v80
      %99 = vmatprep.subr.mxu0 0.0
      %100 = vmatpush1.msra.mxu0 %v79
      %101 = vmatprep.subr.mxu0 0.0
      %102 = vmatpush1.msra.mxu0 %v78
      %103 = vmatprep.subr.mxu0 0.0
      %104 = vmatpush1.msra.mxu0 %v77
      %105 = vmatprep.subr.mxu0 0.0
      %106 = vmatpush1.msra.mxu0 %v76
      %107 = vmatprep.subr.mxu0 0.0
      %108 = vmatpush1.msra.mxu0 %v75
      %109 = vmatprep.subr.mxu0 0.0
      %110 = vmatpush1.msra.mxu0 %v74
      %111 = vmatprep.subr.mxu0 0.0
      %112 = vmatpush1.msra.mxu0 %v73
      %113 = vmatprep.subr.mxu0 0.0
      %114 = vmatpush1.msra.mxu0 %v72
      %115 = vmatprep.subr.mxu0 0.0
      %116 = vmatpush1.msra.mxu0 %v71
      %117 = vmatprep.subr.mxu0 0.0
      %118 = vmatpush1.msra.mxu0 %v70
      %119 = vmatprep.subr.mxu0 0.0
      %120 = vmatpush1.msra.mxu0 %v69
      %121 = vmatprep.subr.mxu0 0.0
      %122 = vmatpush1.msra.mxu0 %v68
      %123 = vmatprep.subr.mxu0 0.0
      %124 = vmatpush2.msra.mxu0 0.0
      %125 = vmatprep.subr.mxu0 0.0
      %126 = vmatpush2.msra.mxu0 0.0
      %127 = vmatprep.subr.mxu0 0.0
      %128 = vmatpush2.msra.mxu0 0.0
      %129 = vmatprep.subr.mxu0 0.0
      %130 = vmatpush2.msra.mxu0 0.0
      %131 = vmatprep.subr.mxu0 0.0
      %132 = vmatpush2.msra.mxu0 0.0
      %133 = vmatprep.subr.mxu0 0.0
      %134 = vmatpush2.msra.mxu0 0.0
      %135 = vmatprep.subr.mxu0 0.0
      %136 = vmatpush2.msra.mxu0 0.0
      %137 = vmatprep.subr.mxu0 0.0
      %138 = vmatpush2.msra.mxu0 0.0
      %139 = vmatprep.subr.mxu0 0.0
      %140 = vmatpush2.msra.mxu0 0.0
      %141 = vmatprep.subr.mxu0 0.0
      %142 = vmatpush2.msra.mxu0 0.0
      %143 = vmatprep.subr.mxu0 0.0
      %144 = vmatpush2.msra.mxu0 0.0
      %145 = vmatprep.subr.mxu0 0.0
      %146 = vmatpush2.msra.mxu0 0.0
      %147 = vmatprep.subr.mxu0 0.0
      %148 = vmatpush2.msra.mxu0 0.0
      %149 = vmatprep.subr.mxu0 0.0
      %150 = vmatpush2.msra.mxu0 0.0
      %151 = vmatprep.subr.mxu0 0.0
      %152 = vmatpush2.msra.mxu0 0.0
      %153 = vmatprep.subr.mxu0 0.0
      %154 = vmatpush2.msra.mxu0 0.0
      %155 = vmatprep.mubr.f32.mxu0 0.0
      %156 = vmatmul.mubr.f32.gmra.mxu0 %v66
      %v157 = vpop.f32.mrf.mxu0
      %v158 = vadd.f32 %v89, %v157
      %v159 = vpop.f32.mrf.mxu0
      %160 = vmatprep.mubr.f32.mxu0 0.0
      %161 = vmatmul.mubr.f32.gmra.mxu0 %v67
      %v162 = vpop.f32.mrf.mxu0
      %v163 = vadd.f32 %v89, %v162
      %v164 = vpop.f32.mrf.mxu0
      %165 = vdwg.mxu0
      %166 = vadd.xlane.f32.xlu0 %v158
      %v167 = vpop.xlane.xlu0 %166
      %168 = vadd.xlane.f32.xlu0 %v163
      %v169 = vpop.xlane.xlu0 %168
      %v170 = vmul.f32 %v167, 0.03125
      %v171 = vmul.f32 %v169, 0.03125
      %v172 = vlaneseq
      %v173 = vand.u32 %v172, 127
      %vm174 = vcmp.lt.s32.totalorder %v173, 32
      %v175 = vsub.f32 %v158, %v170
      %v176 = vsub.f32 %v163, %v171
      %v177 = vsel %vm174, %v175, 0.0
      %v178 = vsel %vm174, %v176, 0.0
      %v179 = vmul.f32 %v177, %v177
      %v180 = vmul.f32 %v178, %v178
      %181 = vadd.xlane.f32.xlu0 %v179
      %v182 = vpop.xlane.xlu0 %181
      %183 = vadd.xlane.f32.xlu0 %v180
      %v184 = vpop.xlane.xlu0 %183
      %v185 = vmul.f32 %v182, 0.03125
      %v186 = vmul.f32 %v184, 0.03125
      %v187 = vadd.f32 %v185, 1e-12
      %v188 = vadd.f32 %v186, 1e-12
      %v189 = vrsqrt.pop %v187
      %v190 = vrsqrt.pop %v188
      %v191 = vmul.f32 %v177, %v189
      %v192 = vmul.f32 %v178, %v190
      %193 = vst [vmem:[#allocation2] sm:$0xff] %v191
      %194 = vst [vmem:[#allocation2 + $0x8] sm:$0xff] %v192
    $region37: #{tpu_custom_call.1} parent=1 // pred_fallthru
      _
    %v195 = vld [vmem:[#allocation2] sm:$0xff]
    %v196 = vld [vmem:[#allocation2 + $0x8] sm:$0xff]
    %v197 = vld [vmem:[#allocation8] sm:$0xff]
    %v198 = vld [vmem:[#allocation8 + $0x8] sm:$0xff]
    %v199 = vld [vmem:[#allocation8 + $0x10] sm:$0xff]
    %v200 = vld [vmem:[#allocation8 + $0x18] sm:$0xff]
    %v201 = vld [vmem:[#allocation8 + $0x20] sm:$0xff]
    %v202 = vld [vmem:[#allocation8 + $0x28] sm:$0xff]
    %v203 = vld [vmem:[#allocation8 + $0x30] sm:$0xff]
    %v204 = vld [vmem:[#allocation8 + $0x38] sm:$0xff]
    %v205 = vld [vmem:[#allocation8 + $0x40] sm:$0xff]
    %v206 = vld [vmem:[#allocation8 + $0x48] sm:$0xff]
    %v207 = vld [vmem:[#allocation8 + $0x50] sm:$0xff]
    %v208 = vld [vmem:[#allocation8 + $0x58] sm:$0xff]
    %v209 = vld [vmem:[#allocation8 + $0x60] sm:$0xff]
    %v210 = vld [vmem:[#allocation8 + $0x68] sm:$0xff]
    %v211 = vld [vmem:[#allocation8 + $0x70] sm:$0xff]
    %v212 = vld [vmem:[#allocation8 + $0x78] sm:$0xff]
    %v213 = vld [vmem:[%s4] sm:$0x1]
    %v215 = vlaneseq
    %v216 = vshrl.u32 %v215, 7
    %v217 = vsub.s32 0, %v216
    %v218 = vrot.slane %v213, %v217
    %220 = vmatprep.subr.mxu0 0.0
    %221 = vmatpush1.msra.mxu0 %v212
    %222 = vmatprep.subr.mxu0 0.0
    %223 = vmatpush1.msra.mxu0 %v211
    %224 = vmatprep.subr.mxu0 0.0
    %225 = vmatpush1.msra.mxu0 %v210
    %226 = vmatprep.subr.mxu0 0.0
    %227 = vmatpush1.msra.mxu0 %v209
    %228 = vmatprep.subr.mxu0 0.0
    %229 = vmatpush1.msra.mxu0 %v208
    %230 = vmatprep.subr.mxu0 0.0
    %231 = vmatpush1.msra.mxu0 %v207
    %232 = vmatprep.subr.mxu0 0.0
    %233 = vmatpush1.msra.mxu0 %v206
    %234 = vmatprep.subr.mxu0 0.0
    %235 = vmatpush1.msra.mxu0 %v205
    %236 = vmatprep.subr.mxu0 0.0
    %237 = vmatpush1.msra.mxu0 %v204
    %238 = vmatprep.subr.mxu0 0.0
    %239 = vmatpush1.msra.mxu0 %v203
    %240 = vmatprep.subr.mxu0 0.0
    %241 = vmatpush1.msra.mxu0 %v202
    %242 = vmatprep.subr.mxu0 0.0
    %243 = vmatpush1.msra.mxu0 %v201
    %244 = vmatprep.subr.mxu0 0.0
    %245 = vmatpush1.msra.mxu0 %v200
    %246 = vmatprep.subr.mxu0 0.0
    %247 = vmatpush1.msra.mxu0 %v199
    %248 = vmatprep.subr.mxu0 0.0
    %249 = vmatpush1.msra.mxu0 %v198
    %250 = vmatprep.subr.mxu0 0.0
    %251 = vmatpush1.msra.mxu0 %v197
    %252 = vmatprep.subr.mxu0 0.0
    %253 = vmatpush2.msra.mxu0 0.0
    %254 = vmatprep.subr.mxu0 0.0
    %255 = vmatpush2.msra.mxu0 0.0
    %256 = vmatprep.subr.mxu0 0.0
    %257 = vmatpush2.msra.mxu0 0.0
    %258 = vmatprep.subr.mxu0 0.0
    %259 = vmatpush2.msra.mxu0 0.0
    %260 = vmatprep.subr.mxu0 0.0
    %261 = vmatpush2.msra.mxu0 0.0
    %262 = vmatprep.subr.mxu0 0.0
    %263 = vmatpush2.msra.mxu0 0.0
    %264 = vmatprep.subr.mxu0 0.0
    %265 = vmatpush2.msra.mxu0 0.0
    %266 = vmatprep.subr.mxu0 0.0
    %267 = vmatpush2.msra.mxu0 0.0
    %268 = vmatprep.subr.mxu0 0.0
    %269 = vmatpush2.msra.mxu0 0.0
    %270 = vmatprep.subr.mxu0 0.0
    %271 = vmatpush2.msra.mxu0 0.0
    %272 = vmatprep.subr.mxu0 0.0
    %273 = vmatpush2.msra.mxu0 0.0
    %274 = vmatprep.subr.mxu0 0.0
    %275 = vmatpush2.msra.mxu0 0.0
    %276 = vmatprep.subr.mxu0 0.0
    %277 = vmatpush2.msra.mxu0 0.0
    %278 = vmatprep.subr.mxu0 0.0
    %279 = vmatpush2.msra.mxu0 0.0
    %280 = vmatprep.subr.mxu0 0.0
    %281 = vmatpush2.msra.mxu0 0.0
    %282 = vmatprep.subr.mxu0 0.0
    %283 = vmatpush2.msra.mxu0 0.0
    %284 = vmatprep.mubr.f32.mxu0 0.0
    %285 = vmatmul.mubr.f32.gmra.mxu0 %v195
    %v286 = vpop.f32.mrf.mxu0
    %v287 = vadd.f32 %v218, %v286
    %v288 = vpop.f32.mrf.mxu0
    %289 = vmatprep.mubr.f32.mxu0 0.0
    %290 = vmatmul.mubr.f32.gmra.mxu0 %v196
    %v291 = vpop.f32.mrf.mxu0
    %v292 = vadd.f32 %v218, %v291
    %v293 = vpop.f32.mrf.mxu0
    %294 = vdwg.mxu0
    %295 = vst [vmem:[#allocation9] sm:$0xff] %v287
    %296 = vst [vmem:[#allocation9 + $0x8] sm:$0xff] %v292
    // Predicated region
    $region38: #{tpu_custom_call.1} parent=1 // pred_check
      _
    $region39: #{tpu_custom_call.1} parent=1 // pred_check_branch
      %298 = sbr.rel (0) target = $region41
    $region40: #{tpu_custom_call.1} parent=1 // pred_region
      %s300 = ssub.s32 256, 256
      %301 = vsyncadd [#allocation5], %s300
      %s302 = sshll.u32 [#allocation9], 4
      %s303 = int_to_ptr.vmem [resolvable:$true] %s302
      %308 = dma.vmem_to_hbm [thread:$0]  %s303, 256, %s5, [#allocation5], 128, 128, 8
    $region41: #{tpu_custom_call.1} parent=1 // pred_fallthru
      _
    // Predicated region
    $region42: #{tpu_custom_call.1} parent=1 // pred_check
      _
    $region43: #{tpu_custom_call.1} parent=1 // pred_check_branch
      %310 = sbr.rel (0) target = $region45
    $region44: #{tpu_custom_call.1} parent=1 // pred_region
      %311 = dma.done [#allocation5], 256
    $region45: #{tpu_custom_call.1} parent=1 // pred_fallthru
      _
    %312 = vsyncpa [#allocation4], 1
    %313 = vsyncpa [#allocation7], 1
    %314 = vsyncpa [#allocation5], 1

</llo_original>
